<compile_context>
chip_gen: v6e
topology: v6e:2x2x1
jax: 0.10.0
libtpu: 0.0.40
codegen_flags: <defaults>
</compile_context>

<pallas_src>
import math
import jax
import jax.numpy as jnp
from jax.experimental import pallas as pl
from jax.experimental.pallas import tpu as pltpu

# HardConcrete constants (flop defaults)
BETA = 1.0          # temperature
STRETCH = 0.1
LIMIT_L = -STRETCH
LIMIT_R = 1.0 + STRETCH
EPS = 1e-6


def _hc_linear_kernel(x_ref, w_ref, m_ref, b_ref, o_ref):
    """One (tm, tn) f32 output tile; grid axis 2 iterates over K tiles."""
    k = pl.program_id(2)

    # Initialize the resident output tile with the bias (instead of zeros +
    # a separate epilogue add): one fewer pass over the tile.
    @pl.when(k == 0)
    def _():
        o_ref[...] = jnp.broadcast_to(b_ref[...], o_ref.shape)

    # Mask the activations: f32 VPU multiply with a lane-dense (1, tk) mask
    # (v5e has no bf16 VALU), then feed bf16 operands to the MXU with f32
    # accumulation into the resident output tile.
    xm = (x_ref[...].astype(jnp.float32) * m_ref[...]).astype(jnp.bfloat16)
    o_ref[...] += jnp.dot(xm, w_ref[...], preferred_element_type=jnp.float32)


def _round_up(x, m):
    return (x + m - 1) // m * m


def _pick_tile(dim, candidates=(512, 256, 128)):
    for t in candidates:
        if dim >= t and dim % t == 0:
            return t
    return dim  # full extent (always a legal block)


def hard_concrete_linear(data, weight, log_alpha, u_noise, bias,
                         *, tm=None, tn=None, tk=None):
    """data: (..., K); weight: (K, N); log_alpha, u_noise: (K,); bias: (N,)."""
    K, N = weight.shape
    lead = data.shape[:-1]
    x = data.reshape(-1, K)
    M = x.shape[0]

    # ---- hard-concrete mask, precomputed once (O(K); trivial vs the matmul) ----
    u = jnp.clip(u_noise.astype(jnp.float32), EPS, 1.0 - EPS)
    la = log_alpha.astype(jnp.float32)
    logits = (jnp.log(u) - jnp.log1p(-u) + la) / BETA
    mask = jnp.clip(jax.nn.sigmoid(logits) * (LIMIT_R - LIMIT_L) + LIMIT_L,
                    0.0, 1.0)

    # ---- tile selection & M padding ----
    M_pad = _round_up(M, 8)
    if tm is None:
        tm = M_pad if M_pad <= 256 else 256
    M_pad = _round_up(M_pad, tm)
    if tn is None:
        tn = _pick_tile(N)
        # Give the second TensorCore (v7x) work when the M axis is degenerate.
        if M_pad // tm == 1 and N // tn == 1 and N % 256 == 0:
            tn = N // 2
    if tk is None:
        tk = _pick_tile(K)
    assert M_pad % tm == 0 and N % tn == 0 and K % tk == 0, (M_pad, N, K, tm, tn, tk)

    # bf16 operand streams (f32 accumulation inside the kernel).
    x = x.astype(jnp.bfloat16)
    if M_pad != M:
        x = jnp.pad(x, ((0, M_pad - M), (0, 0)))
    w_bf = weight.astype(jnp.bfloat16)
    m2 = mask.reshape(1, K)                      # lane-dense mask row (f32)
    b2 = bias.reshape(1, N).astype(jnp.float32)

    out = pl.pallas_call(
        _hc_linear_kernel,
        out_shape=jax.ShapeDtypeStruct((M_pad, N), jnp.float32),
        grid_spec=pltpu.PrefetchScalarGridSpec(
            num_scalar_prefetch=0,
            grid=(M_pad // tm, N // tn, K // tk),
            in_specs=[
                pl.BlockSpec((tm, tk), lambda i, j, k: (i, k)),   # x       (bf16)
                pl.BlockSpec((tk, tn), lambda i, j, k: (k, j)),   # weight  (bf16)
                pl.BlockSpec((1, tk), lambda i, j, k: (0, k)),    # mask    (f32)
                pl.BlockSpec((1, tn), lambda i, j, k: (0, j)),    # bias    (f32)
            ],
            out_specs=pl.BlockSpec((tm, tn), lambda i, j, k: (i, j)),
        ),
        compiler_params=pltpu.CompilerParams(
            dimension_semantics=("parallel", "parallel", "arbitrary"),
            vmem_limit_bytes=32 * 1024 * 1024,
        ),
    )(x, w_bf, m2, b2)

    if M_pad != M:
        out = out[:M]
    return out.reshape(*lead, N)


def _reference(data, weight, log_alpha, u_noise, bias):
    """Pure-JAX f32 reference matching the PyTorch training-mode dense branch."""
    logits = (jnp.log(u_noise) - jnp.log1p(-u_noise) + log_alpha) / BETA
    s = jax.nn.sigmoid(logits) * (LIMIT_R - LIMIT_L) + LIMIT_L
    mask = jnp.clip(s, 0.0, 1.0)
    cw = weight * mask[:, None]
    return data @ cw + bias


if __name__ == "__main__":
    # Small shapes: batch=2, seq=8, in_features=512, out_features=256
    B, S, IN, OUT = 2, 8, 512, 256
    key = jax.random.PRNGKey(0)
    k_x, k_w, k_la, k_u, k_b = jax.random.split(key, 5)

    # Deterministic parameter init mirroring reset_parameters():
    #   weight: xavier_uniform over (in_features, out_features)
    xav = math.sqrt(6.0 / (IN + OUT))
    weight = jax.random.uniform(k_w, (IN, OUT), jnp.float32, -xav, xav)
    #   log_alpha ~ N(log(0.5) - log(0.5) = 0, 0.01)
    log_alpha = 0.0 + 0.01 * jax.random.normal(k_la, (IN,), jnp.float32)
    #   bias ~ U(-1/sqrt(fan_in), 1/sqrt(fan_in)), fan_in = in_features
    bound = 1.0 / math.sqrt(IN)
    bias = jax.random.uniform(k_b, (OUT,), jnp.float32, -bound, bound)
    # Training-mode uniform noise for the hard-concrete sample (fixed for determinism)
    u_noise = jax.random.uniform(k_u, (IN,), jnp.float32, EPS, 1.0 - EPS)

    data = jax.random.normal(k_x, (B, S, IN), jnp.float32)

    # TODO(synk): eval-mode index_select over nonzero mask indices is a
    # data-dependent gather; the dense masked matmul here is numerically
    # equivalent (pruned rows contribute exactly zero).
    # tk=256 exercises the K-accumulation path; tn defaults to a 2-way N split.
    out = hard_concrete_linear(data, weight, log_alpha, u_noise, bias, tk=256)
    out = jax.block_until_ready(out)

    ref = _reference(data, weight, log_alpha, u_noise, bias)
    assert out.shape == (B, S, OUT)
    # bf16 operand rounding with f32 accumulation -> loosened tolerance.
    assert jnp.allclose(out, ref, atol=2e-2, rtol=2e-2), "mismatch vs reference"

    print("KERNEL_OK")
</pallas_src>

<mosaic_0001>
module attributes {stable_mosaic.version = 11 : i64} {
  func.func @_hc_linear_kernel(%arg0: i32, %arg1: i32, %arg2: i32, %arg3: memref<16x256xbf16, #tpu.memory_space<vmem>>, %arg4: memref<256x128xbf16, #tpu.memory_space<vmem>>, %arg5: memref<1x256xf32, #tpu.memory_space<vmem>>, %arg6: memref<1x128xf32, #tpu.memory_space<vmem>>, %arg7: memref<16x128xf32, #tpu.memory_space<vmem>>) attributes {dimension_semantics = [#tpu.dimension_semantics<parallel>, #tpu.dimension_semantics<parallel>, #tpu.dimension_semantics<arbitrary>], iteration_bounds = array<i64: 1, 2, 2>, scalar_prefetch = 0 : i64, scratch_operands = 0 : i64, tpu.core_type = #tpu.core_type<tc>, window_params = [{transform_indices = @transform_0, window_bounds = array<i64: 16, 256>}, {transform_indices = @transform_1, window_bounds = array<i64: 256, 128>}, {transform_indices = @transform_2, window_bounds = array<i64: 1, 256>}, {transform_indices = @transform_3, window_bounds = array<i64: 1, 128>}, {transform_indices = @transform_4, window_bounds = array<i64: 16, 128>}]} {
    %c0_i32 = arith.constant 0 : i32
    %0 = arith.cmpi eq, %arg2, %c0_i32 : i32
    %1 = arith.extui %0 : i1 to i32
    %c0_i32_0 = arith.constant 0 : i32
    %2 = arith.cmpi ne, %1, %c0_i32_0 : i32
    scf.if %2 {
      %c0_10 = arith.constant 0 : index
      %c0_11 = arith.constant 0 : index
      %14 = vector.load %arg6[%c0_10, %c0_11] : memref<1x128xf32, #tpu.memory_space<vmem>>, vector<1x128xf32>
      %15 = vector.shape_cast %14 : vector<1x128xf32> to vector<1x128xf32>
      %16 = vector.broadcast %15 : vector<1x128xf32> to vector<16x128xf32>
      %c0_12 = arith.constant 0 : index
      %c0_13 = arith.constant 0 : index
      %17 = vector.load %arg7[%c0_12, %c0_13] : memref<16x128xf32, #tpu.memory_space<vmem>>, vector<16x128xf32>
      tpu.vector_store %arg7[%c0_12, %c0_13], %16 {strides = array<i32>} : memref<16x128xf32, #tpu.memory_space<vmem>>, vector<16x128xf32>,
    } else {
    }
    %c0 = arith.constant 0 : index
    %c0_1 = arith.constant 0 : index
    %3 = vector.load %arg3[%c0, %c0_1] : memref<16x256xbf16, #tpu.memory_space<vmem>>, vector<16x256xbf16>
    %4 = arith.extf %3 : vector<16x256xbf16> to vector<16x256xf32>
    %c0_2 = arith.constant 0 : index
    %c0_3 = arith.constant 0 : index
    %5 = vector.load %arg5[%c0_2, %c0_3] : memref<1x256xf32, #tpu.memory_space<vmem>>, vector<1x256xf32>
    %6 = vector.broadcast %5 : vector<1x256xf32> to vector<16x256xf32>
    %7 = arith.mulf %4, %6 : vector<16x256xf32>
    %8 = arith.truncf %7 : vector<16x256xf32> to vector<16x256xbf16>
    %c0_4 = arith.constant 0 : index
    %c0_5 = arith.constant 0 : index
    %9 = vector.load %arg7[%c0_4, %c0_5] : memref<16x128xf32, #tpu.memory_space<vmem>>, vector<16x128xf32>
    %c0_6 = arith.constant 0 : index
    %c0_7 = arith.constant 0 : index
    %10 = vector.load %arg4[%c0_6, %c0_7] : memref<256x128xbf16, #tpu.memory_space<vmem>>, vector<256x128xbf16>
    %cst = arith.constant dense<0.000000e+00> : vector<16x128xf32>
    %11 = tpu.matmul %8, %10, %cst {dimension_numbers = #tpu.dot_dimension_numbers<[1], [0], [0], [1], [0, 0, 1, 1], [], []>} : vector<16x256xbf16>, vector<256x128xbf16>, vector<16x128xf32> -> vector<16x128xf32>
    %12 = arith.addf %9, %11 : vector<16x128xf32>
    %c0_8 = arith.constant 0 : index
    %c0_9 = arith.constant 0 : index
    %13 = vector.load %arg7[%c0_8, %c0_9] : memref<16x128xf32, #tpu.memory_space<vmem>>, vector<16x128xf32>
    tpu.vector_store %arg7[%c0_8, %c0_9], %12 {strides = array<i32>} : memref<16x128xf32, #tpu.memory_space<vmem>>, vector<16x128xf32>,
    return
  }
  func.func @transform_0(%arg0: i32, %arg1: i32, %arg2: i32) -> (i32, i32) {
    %c0_i32 = arith.constant 0 : i32
    return %arg0, %arg2 : i32, i32
  }
  func.func @transform_1(%arg0: i32, %arg1: i32, %arg2: i32) -> (i32, i32) {
    %c0_i32 = arith.constant 0 : i32
    return %arg2, %arg1 : i32, i32
  }
  func.func @transform_2(%arg0: i32, %arg1: i32, %arg2: i32) -> (i32, i32) {
    %c0_i32 = arith.constant 0 : i32
    %c0_i32_0 = arith.constant 0 : i32
    return %c0_i32, %arg2 : i32, i32
  }
  func.func @transform_3(%arg0: i32, %arg1: i32, %arg2: i32) -> (i32, i32) {
    %c0_i32 = arith.constant 0 : i32
    %c0_i32_0 = arith.constant 0 : i32
    return %c0_i32, %arg1 : i32, i32
  }
  func.func @transform_4(%arg0: i32, %arg1: i32, %arg2: i32) -> (i32, i32) {
    %c0_i32 = arith.constant 0 : i32
    return %arg0, %arg1 : i32, i32
  }
}

</mosaic_0001>

<llo_original>
// kernel: tpu_custom_call.1
$region0: #{tpu_custom_call.1}
  #allocation0 [shape = 'u32[]', space=smem, size = 0x4, offset = 0x4, fixed_abs, tag = 'smem constant byte address 0x4 - core index']
  #allocation1 [shape = 'u32[144,128]{1,0:T(1,128)}', space=vmem, size = 0x12000, scoped, tag = 'internal scratch']
  %s0 = inlined_call_operand.hbm [shape: bf16[16,512], index: 0, kind: input, shape index: {}]
  %s1 = inlined_call_operand.hbm [shape: bf16[512,256], index: 1, kind: input, shape index: {}]
  %s2 = inlined_call_operand.hbm [shape: f32[1,512], index: 2, kind: input, shape index: {}]
  %s3 = inlined_call_operand.vmem [shape: f32[1,256], index: 3, kind: input, shape index: {}]
  %s4 = inlined_call_operand.hbm [shape: f32[16,256], index: 4, kind: output, shape index: {}]
  %s5 = sld [smem:[#allocation0]]
  $region65: #{tpu_custom_call.1} parent=0
    _
  %s7 = ssub.s32 1, %s5
  %s8 = scalar_select 0, %s7, %s5
  $region1: #{tpu_custom_call.1} parent=0
    #allocation2 [shape = 'u8[16384]{0}', space=vmem, size = 0x4000, scoped, tag = 'input window, operand 0']
    #allocation3 [shape = 's32[2]{0}', space=sflag, size = 0x8, scoped, tag = 'scoped memory for tpu_custom_call.1']
    #allocation4 [shape = 's32[2]{0}', space=sflag, size = 0x8, scoped, tag = 'scoped memory for tpu_custom_call.1']
    #allocation5 [shape = 'u8[131072]{0}', space=vmem, size = 0x20000, scoped, tag = 'input window, operand 1']
    #allocation6 [shape = 's32[2]{0}', space=sflag, size = 0x8, scoped, tag = 'scoped memory for tpu_custom_call.1']
    #allocation7 [shape = 'u8[2048]{0}', space=vmem, size = 0x800, scoped, tag = 'input window, operand 2']
    #allocation8 [shape = 'u8[16384]{0}', space=vmem, size = 0x4000, scoped, tag = 'output window, operand 0']
    %9 = vsyncpa [#allocation3], 0
    %s10 = scalar_lea.sflag [#allocation3], 1
    %11 = vsyncpa %s10, 0
    %12 = vsyncpa [#allocation6], 0
    %s13 = scalar_lea.sflag [#allocation6], 1
    %14 = vsyncpa %s13, 0
    %15 = vsyncpa [#allocation4], 0
    %s16 = scalar_lea.sflag [#allocation4], 1
    %17 = vsyncpa %s16, 0
    loop: start=0, step=1, limit=6
    $region2: #{tpu_custom_call.1} parent=1 // loop_pre_header
      _
    $region3: #{tpu_custom_call.1} parent=1 // loop_header
      %s19 = sphi 0, %s23
      %p20 = scmp.ge.s32.totalorder %s19, 6
      %s26 = sphi 0, %s45
      %s27 = sphi 0, %s41
      %s28 = sphi 0, %s37
      %s29 = sphi 0, %s26
      %s30 = sphi 0, %s27
      %s31 = sphi 0, %s28
      %s32 = sphi 0, %s29
      %s33 = sphi 0, %s30
      %s34 = sphi 0, %s31
      %s50 = sphi 0, %s52
      %s53 = sphi 0, %s50
      %s54 = sphi 0, %s53
      %s70 = sphi 0, %s54
      %s78 = sphi 0, %s80
      %s81 = sphi 0, %s78
      %s82 = sphi 0, %s81
      %s98 = sphi 0, %s82
      %s104 = sphi 0, %s106
      %s107 = sphi 0, %s104
      %s108 = sphi 0, %s107
      %s124 = sphi 0, %s108
      %s130 = sphi 0, %s132
      %s133 = sphi 0, %s130
      %s134 = sphi 0, %s133
      %s150 = sphi 0, %s134
      %s158 = sphi 0, %s160
      %s161 = sphi 0, %s158
      %s162 = sphi 0, %s161
      %s178 = sphi 0, %s162
    $region4: #{tpu_custom_call.1} parent=1 // loop_header_branch
      %22 = sbr.rel (%p20) target = $region8
    $region5: #{tpu_custom_call.1} parent=1 // loop_body
      %s24 = ssub.s32 %s19, 1
      %s25 = ssub.s32 %s19, 2
      %s35 = sadd.s32 1, %s28
      %p36 = scmp.ge.s32.totalorder %s35, 2
      %s37 = scalar_select %p36, 0, %s35
      %s38 = sadd.s32 1, %s27
      %s39 = scalar_select %p36, %s38, %s27
      %p40 = scmp.ge.s32.totalorder %s39, 2
      %s41 = scalar_select %p40, 0, %s39
      %s42 = sadd.s32 1, %s26
      %s43 = scalar_select %p40, %s42, %s26
      %p44 = scmp.ge.s32.totalorder %s43, 1
      %s45 = scalar_select %p44, 0, %s43
      %s46 = ssub.s32 %s26, %s45
      %s47 = ssub.s32 %s28, %s37
      %s48 = sor.u32 %s46, %s47
      %p49 = scmp.eq.s32.totalorder %s48, 0
      %s51 = sadd.s32 %s50, 1
      %s52 = scalar_select %p49, %s50, %s51
      %p55 = pneg %p49
      %p56 = scmp.eq.s32.totalorder %s19, 3
      %p57 = por %p55, %p56
      %p58 = scmp.ne.s32.totalorder %s50, %s53
      %p59 = scmp.eq.s32.totalorder %s19, 0
      %p60 = por %p58, %p59
      %p61 = scmp.ne.s32.totalorder %s50, %s53
      %p62 = scmp.eq.s32.totalorder %s24, 3
      %p63 = por %p61, %p62
      %p64 = scmp.ne.s32.totalorder %s53, %s54
      %p65 = scmp.eq.s32.totalorder %s24, 0
      %p66 = por %p64, %p65
      %p67 = scmp.ne.s32.totalorder %s53, %s54
      %p68 = scmp.eq.s32.totalorder %s25, 3
      %p69 = por %p67, %p68
      %p71 = scmp.ne.s32.totalorder %s54, %s70
      %p72 = scmp.eq.s32.totalorder %s25, 0
      %p73 = por %p71, %p72
      %s74 = ssub.s32 %s28, %s37
      %s75 = ssub.s32 %s27, %s41
      %s76 = sor.u32 %s74, %s75
      %p77 = scmp.eq.s32.totalorder %s76, 0
      %s79 = sadd.s32 %s78, 1
      %s80 = scalar_select %p77, %s78, %s79
      %p83 = pneg %p77
      %p84 = scmp.eq.s32.totalorder %s19, 3
      %p85 = por %p83, %p84
      %p86 = scmp.ne.s32.totalorder %s78, %s81
      %p87 = scmp.eq.s32.totalorder %s19, 0
      %p88 = por %p86, %p87
      %p89 = scmp.ne.s32.totalorder %s78, %s81
      %p90 = scmp.eq.s32.totalorder %s24, 3
      %p91 = por %p89, %p90
      %p92 = scmp.ne.s32.totalorder %s81, %s82
      %p93 = scmp.eq.s32.totalorder %s24, 0
      %p94 = por %p92, %p93
      %p95 = scmp.ne.s32.totalorder %s81, %s82
      %p96 = scmp.eq.s32.totalorder %s25, 3
      %p97 = por %p95, %p96
      %p99 = scmp.ne.s32.totalorder %s82, %s98
      %p100 = scmp.eq.s32.totalorder %s25, 0
      %p101 = por %p99, %p100
      %s102 = ssub.s32 %s28, %s37
      %p103 = scmp.eq.s32.totalorder %s102, 0
      %s105 = sadd.s32 %s104, 1
      %s106 = scalar_select %p103, %s104, %s105
      %p109 = pneg %p103
      %p110 = scmp.eq.s32.totalorder %s19, 3
      %p111 = por %p109, %p110
      %p112 = scmp.ne.s32.totalorder %s104, %s107
      %p113 = scmp.eq.s32.totalorder %s19, 0
      %p114 = por %p112, %p113
      %p115 = scmp.ne.s32.totalorder %s104, %s107
      %p116 = scmp.eq.s32.totalorder %s24, 3
      %p117 = por %p115, %p116
      %p118 = scmp.ne.s32.totalorder %s107, %s108
      %p119 = scmp.eq.s32.totalorder %s24, 0
      %p120 = por %p118, %p119
      %p121 = scmp.ne.s32.totalorder %s107, %s108
      %p122 = scmp.eq.s32.totalorder %s25, 3
      %p123 = por %p121, %p122
      %p125 = scmp.ne.s32.totalorder %s108, %s124
      %p126 = scmp.eq.s32.totalorder %s25, 0
      %p127 = por %p125, %p126
      %s128 = ssub.s32 %s27, %s41
      %p129 = scmp.eq.s32.totalorder %s128, 0
      %s131 = sadd.s32 %s130, 1
      %s132 = scalar_select %p129, %s130, %s131
      %p135 = pneg %p129
      %p136 = scmp.eq.s32.totalorder %s19, 3
      %p137 = por %p135, %p136
      %p138 = scmp.ne.s32.totalorder %s130, %s133
      %p139 = scmp.eq.s32.totalorder %s19, 0
      %p140 = por %p138, %p139
      %p141 = scmp.ne.s32.totalorder %s130, %s133
      %p142 = scmp.eq.s32.totalorder %s24, 3
      %p143 = por %p141, %p142
      %p144 = scmp.ne.s32.totalorder %s133, %s134
      %p145 = scmp.eq.s32.totalorder %s24, 0
      %p146 = por %p144, %p145
      %p147 = scmp.ne.s32.totalorder %s133, %s134
      %p148 = scmp.eq.s32.totalorder %s25, 3
      %p149 = por %p147, %p148
      %p151 = scmp.ne.s32.totalorder %s134, %s150
      %p152 = scmp.eq.s32.totalorder %s25, 0
      %p153 = por %p151, %p152
      %s154 = ssub.s32 %s26, %s45
      %s155 = ssub.s32 %s27, %s41
      %s156 = sor.u32 %s154, %s155
      %p157 = scmp.eq.s32.totalorder %s156, 0
      %s159 = sadd.s32 %s158, 1
      %s160 = scalar_select %p157, %s158, %s159
      %p163 = pneg %p157
      %p164 = scmp.eq.s32.totalorder %s19, 3
      %p165 = por %p163, %p164
      %p166 = scmp.ne.s32.totalorder %s158, %s161
      %p167 = scmp.eq.s32.totalorder %s19, 0
      %p168 = por %p166, %p167
      %p169 = scmp.ne.s32.totalorder %s158, %s161
      %p170 = scmp.eq.s32.totalorder %s24, 3
      %p171 = por %p169, %p170
      %p172 = scmp.ne.s32.totalorder %s161, %s162
      %p173 = scmp.eq.s32.totalorder %s24, 0
      %p174 = por %p172, %p173
      %p175 = scmp.ne.s32.totalorder %s161, %s162
      %p176 = scmp.eq.s32.totalorder %s25, 3
      %p177 = por %p175, %p176
      %p179 = scmp.ne.s32.totalorder %s162, %s178
      %p180 = scmp.eq.s32.totalorder %s25, 0
      %p181 = por %p179, %p180
      %p182 = scmp.le.s32.totalorder 1, %s19
      %p183 = scmp.lt.s32.totalorder %s19, 5
      %p184 = pnand %p182, %p183
      %p185 = pneg %p184
      // Predicated region
      $region9: #{tpu_custom_call.1} parent=5 // pred_check
        _
      $region10: #{tpu_custom_call.1} parent=5 // pred_check_branch
        %187 = sbr.rel (%p184) target = $region12
      $region11: #{tpu_custom_call.1} parent=5 // pred_region
        %s188 = ssub.s32 %s19, 1
      $region12: #{tpu_custom_call.1} parent=5 // pred_fallthru
        _
      %p189 = scmp.lt.s32.totalorder %s19, 4
      // Predicated region
      $region13: #{tpu_custom_call.1} parent=5 // pred_check
        %p190 = pneg %p189
      $region14: #{tpu_custom_call.1} parent=5 // pred_check_branch
        %192 = sbr.rel (%p190) target = $region16
      $region15: #{tpu_custom_call.1} parent=5 // pred_region
        // Predicated region
        $region17: #{tpu_custom_call.1} parent=15 // pred_check
          %p193 = pneg %p60
        $region18: #{tpu_custom_call.1} parent=15 // pred_check_branch
          %195 = sbr.rel (%p193) target = $region20
        $region19: #{tpu_custom_call.1} parent=15 // pred_region
          %s196 = sand.u32 %s50, 1
          %s197 = scalar_lea.sflag [#allocation3], %s196
          %s198 = sand.u32 %s50, 1
          %s199 = smul.addr %s198, 16
          %s200 = scalar_lea.vmem [#allocation2], %s199
          %s201 = smul.u32 2, %s26
          %s202 = smul.u32 2, %s28
          %s204 = ssub.s32 256, 256
          %205 = vsyncadd %s197, %s204
          %s206 = smul.addr %s201, 4
          %s207 = sadd.s32 %s202, %s206
          %s208 = smul.addr %s207, 64
          %s209 = scalar_lea.hbm %s0, %s208
          %s210 = sshll.u32 %s200, 4
          %s211 = int_to_ptr.vmem [resolvable:$true] %s210
          %216 = dma.hbm_to_vmem [thread:$0]  %s209, 256, %s211, %s197, 256, 128, 8
        $region20: #{tpu_custom_call.1} parent=15 // pred_fallthru
          _
        // Predicated region
        $region21: #{tpu_custom_call.1} parent=15 // pred_check
          %p217 = pneg %p88
        $region22: #{tpu_custom_call.1} parent=15 // pred_check_branch
          %219 = sbr.rel (%p217) target = $region24
        $region23: #{tpu_custom_call.1} parent=15 // pred_region
          %s220 = sand.u32 %s19, 1
          %s221 = scalar_lea.sflag [#allocation6], %s220
          %s222 = sand.u32 %s78, 1
          %s223 = smul.addr %s222, 128
          %s224 = scalar_lea.vmem [#allocation5], %s223
          %s225 = smul.u32 32, %s28
          %s227 = ssub.s32 2048, 2048
          %228 = vsyncadd %s221, %s227
          %s229 = smul.addr %s225, 2
          %s230 = sadd.s32 %s27, %s229
          %s231 = smul.addr %s230, 64
          %s232 = scalar_lea.hbm %s1, %s231
          %s233 = sshll.u32 %s224, 4
          %s234 = int_to_ptr.vmem [resolvable:$true] %s233
          %239 = dma.hbm_to_vmem [thread:$0]  %s232, 2048, %s234, %s221, 128, 64, 4
        $region24: #{tpu_custom_call.1} parent=15 // pred_fallthru
          _
        // Predicated region
        $region25: #{tpu_custom_call.1} parent=15 // pred_check
          %p240 = pneg %p114
        $region26: #{tpu_custom_call.1} parent=15 // pred_check_branch
          %242 = sbr.rel (%p240) target = $region28
        $region27: #{tpu_custom_call.1} parent=15 // pred_region
          %s243 = sand.u32 %s19, 1
          %s244 = scalar_lea.sflag [#allocation6], %s243
          %s245 = sand.u32 %s104, 1
          %s246 = smul.addr %s245, 2
          %s247 = scalar_lea.vmem [#allocation7], %s246
          %s248 = smul.u32 2, %s28
          %s250 = ssub.s32 32, 32
          %251 = vsyncadd %s244, %s250
          %s252 = smul.addr %s248, 16
          %s253 = scalar_lea.hbm %s2, %s252
          %s255 = sshll.u32 %s247, 4
          %s256 = int_to_ptr.vmem [resolvable:$true] %s255
          %258 = dma.hbm_to_vmem [thread:$0]  %s253, 32, %s256, %s244
        $region28: #{tpu_custom_call.1} parent=15 // pred_fallthru
          _
        // Predicated region
        $region29: #{tpu_custom_call.1} parent=15 // pred_check
          %p259 = pneg %p140
        $region30: #{tpu_custom_call.1} parent=15 // pred_check_branch
          %261 = sbr.rel (%p259) target = $region32
        $region31: #{tpu_custom_call.1} parent=15 // pred_region
          %p262 = scmp.lt.s32.totalorder %s27, 1
          %s263 = scalar_select %p262, %s27, 1
          %s264 = scalar_lea.vmem %s3, %s263
        $region32: #{tpu_custom_call.1} parent=15 // pred_fallthru
          _
      $region16: #{tpu_custom_call.1} parent=5 // pred_fallthru
        _
      %p265 = scmp.le.s32.totalorder 1, %s19
      %p266 = scmp.lt.s32.totalorder %s19, 5
      %p267 = pnand %p265, %p266
      %p268 = pneg %p267
      // Predicated region
      $region33: #{tpu_custom_call.1} parent=5 // pred_check
        _
      $region34: #{tpu_custom_call.1} parent=5 // pred_check_branch
        %270 = sbr.rel (%p267) target = $region36
      $region35: #{tpu_custom_call.1} parent=5 // pred_region
        %s271 = ssub.s32 %s19, 1
        %s272 = sand.u32 %s53, 1
        %s273 = scalar_lea.sflag [#allocation3], %s272
        %s274 = sand.u32 %s53, 1
        %s275 = smul.addr %s274, 16
        %s276 = scalar_lea.vmem [#allocation2], %s275
        // Predicated region
        $region37: #{tpu_custom_call.1} parent=35 // pred_check
          %p277 = pneg %p66
        $region38: #{tpu_custom_call.1} parent=35 // pred_check_branch
          %279 = sbr.rel (%p277) target = $region40
        $region39: #{tpu_custom_call.1} parent=35 // pred_region
          %280 = dma.done %s273, 256
        $region40: #{tpu_custom_call.1} parent=35 // pred_fallthru
          _
        %s281 = sand.u32 %s24, 1
        %s282 = scalar_lea.sflag [#allocation6], %s281
        %s283 = sand.u32 %s81, 1
        %s284 = smul.addr %s283, 128
        %s285 = scalar_lea.vmem [#allocation5], %s284
        // Predicated region
        $region41: #{tpu_custom_call.1} parent=35 // pred_check
          %p286 = pneg %p94
        $region42: #{tpu_custom_call.1} parent=35 // pred_check_branch
          %288 = sbr.rel (%p286) target = $region44
        $region43: #{tpu_custom_call.1} parent=35 // pred_region
          %289 = dma.done %s282, 2048
        $region44: #{tpu_custom_call.1} parent=35 // pred_fallthru
          _
        %s290 = sand.u32 %s24, 1
        %s291 = scalar_lea.sflag [#allocation6], %s290
        %s292 = sand.u32 %s107, 1
        %s293 = smul.addr %s292, 2
        %s294 = scalar_lea.vmem [#allocation7], %s293
        // Predicated region
        $region45: #{tpu_custom_call.1} parent=35 // pred_check
          %p295 = pneg %p120
        $region46: #{tpu_custom_call.1} parent=35 // pred_check_branch
          %297 = sbr.rel (%p295) target = $region48
        $region47: #{tpu_custom_call.1} parent=35 // pred_region
          %298 = dma.done %s291, 32
        $region48: #{tpu_custom_call.1} parent=35 // pred_fallthru
          _
        %s299 = sand.u32 %s53, 1
        %s300 = scalar_lea.sflag [#allocation3], %s299
        %s301 = sand.u32 %s53, 1
        %s302 = smul.addr %s301, 16
        %s303 = scalar_lea.vmem [#allocation2], %s302
        %p304 = pneg %p66
        %p305 = pneg %p63
        %s306 = sand.u32 %s24, 1
        %s307 = scalar_lea.sflag [#allocation6], %s306
        %s308 = sand.u32 %s81, 1
        %s309 = smul.addr %s308, 128
        %s310 = scalar_lea.vmem [#allocation5], %s309
        %p311 = pneg %p94
        %p312 = pneg %p91
        %s313 = sand.u32 %s24, 1
        %s314 = scalar_lea.sflag [#allocation6], %s313
        %s315 = sand.u32 %s107, 1
        %s316 = smul.addr %s315, 2
        %s317 = scalar_lea.vmem [#allocation7], %s316
        %p318 = pneg %p120
        %p319 = pneg %p117
        %p320 = scmp.lt.s32.totalorder %s30, 1
        %s321 = scalar_select %p320, %s30, 1
        %s322 = scalar_lea.vmem %s3, %s321
        %p323 = pneg %p146
        %p324 = pneg %p143
        %p325 = pneg %p174
        %p326 = pneg %p171
        %s327 = sand.u32 %s161, 1
        %s328 = scalar_lea.sflag [#allocation4], %s327
        %s329 = sand.u32 %s161, 1
        %s330 = smul.addr %s329, 16
        %s331 = scalar_lea.vmem [#allocation8], %s330
        %s332 = smul.u32 2, %s29
        %s333 = smul.u32 2, %s31
        %s334 = smul.u32 32, %s31
        %s335 = smul.u32 2, %s31
        %p336 = scmp.lt.s32.totalorder %s30, 1
        %s337 = scalar_select %p336, %s30, 1
        %s338 = scalar_lea.vmem %s3, %s337
        %s339 = smul.u32 2, %s29
        %p341 = scmp.eq.s32.totalorder %s31, 0
        // Predicated region
        $region49: #{tpu_custom_call.1} parent=35 // pred_check
          %p342 = pneg %p341
        $region50: #{tpu_custom_call.1} parent=35 // pred_check_branch
          %344 = sbr.rel (%p342) target = $region52
        $region51: #{tpu_custom_call.1} parent=35 // pred_region
          %v345 = vld [vmem:[%s338] sm:$0x1]
          %v347 = vlaneseq
          %v348 = vshrl.u32 %v347, 7
          %v349 = vsub.s32 0, %v348
          %v350 = vrot.slane %v345, %v349
          %352 = vst [vmem:[%s331] sm:$0xff] %v350
          %353 = vst [vmem:[%s331 + $0x8] sm:$0xff] %v350
        $region52: #{tpu_custom_call.1} parent=35 // pred_fallthru
          _
        %v354 = vld [vmem:[%s276] sm:$0xff]
        %v355 = vld [vmem:[%s276 + $0x8] sm:$0xff]
        %v356 = vunpack.c.l.bf16 %v354
        %v357 = vunpack.c.h.bf16 %v354
        %v358 = vunpack.c.l.bf16 %v355
        %v359 = vunpack.c.h.bf16 %v355
        %v360 = vld [vmem:[%s294] sm:$0x3]
        %v362 = vlaneseq
        %v363 = vshrl.u32 %v362, 7
        %v364 = vsub.s32 0, %v363
        %v365 = vrot.slane %v360, %v364
        %v366 = vlaneseq
        %v367 = vshrl.u32 %v366, 7
        %v368 = vsub.s32 1, %v367
        %v369 = vrot.slane %v360, %v368
        %v372 = vmul.f32 %v356, %v365
        %v373 = vmul.f32 %v357, %v369
        %v374 = vmul.f32 %v358, %v365
        %v375 = vmul.f32 %v359, %v369
        %v376 = vpack.c.bf16 %v374, %v372
        %v377 = vpack.c.bf16 %v375, %v373
        %v378 = vld [vmem:[%s331] sm:$0xff]
        %v379 = vld [vmem:[%s331 + $0x8] sm:$0xff]
        %v380 = vld [vmem:[%s285] sm:$0xf]
        %v381 = vld [vmem:[%s285 + $0x4] sm:$0xf]
        %v382 = vld [vmem:[%s285 + $0x8] sm:$0xf]
        %v383 = vld [vmem:[%s285 + $0xc] sm:$0xf]
        %v384 = vld [vmem:[%s285 + $0x10] sm:$0xf]
        %v385 = vld [vmem:[%s285 + $0x14] sm:$0xf]
        %v386 = vld [vmem:[%s285 + $0x18] sm:$0xf]
        %v387 = vld [vmem:[%s285 + $0x1c] sm:$0xf]
        %v388 = vld [vmem:[%s285 + $0x20] sm:$0xf]
        %v389 = vld [vmem:[%s285 + $0x24] sm:$0xf]
        %v390 = vld [vmem:[%s285 + $0x28] sm:$0xf]
        %v391 = vld [vmem:[%s285 + $0x2c] sm:$0xf]
        %v392 = vld [vmem:[%s285 + $0x30] sm:$0xf]
        %v393 = vld [vmem:[%s285 + $0x34] sm:$0xf]
        %v394 = vld [vmem:[%s285 + $0x38] sm:$0xf]
        %v395 = vld [vmem:[%s285 + $0x3c] sm:$0xf]
        %v396 = vld [vmem:[%s285 + $0x40] sm:$0xf]
        %v397 = vld [vmem:[%s285 + $0x44] sm:$0xf]
        %v398 = vld [vmem:[%s285 + $0x48] sm:$0xf]
        %v399 = vld [vmem:[%s285 + $0x4c] sm:$0xf]
        %v400 = vld [vmem:[%s285 + $0x50] sm:$0xf]
        %v401 = vld [vmem:[%s285 + $0x54] sm:$0xf]
        %v402 = vld [vmem:[%s285 + $0x58] sm:$0xf]
        %v403 = vld [vmem:[%s285 + $0x5c] sm:$0xf]
        %v404 = vld [vmem:[%s285 + $0x60] sm:$0xf]
        %v405 = vld [vmem:[%s285 + $0x64] sm:$0xf]
        %v406 = vld [vmem:[%s285 + $0x68] sm:$0xf]
        %v407 = vld [vmem:[%s285 + $0x6c] sm:$0xf]
        %v408 = vld [vmem:[%s285 + $0x70] sm:$0xf]
        %v409 = vld [vmem:[%s285 + $0x74] sm:$0xf]
        %v410 = vld [vmem:[%s285 + $0x78] sm:$0xf]
        %v411 = vld [vmem:[%s285 + $0x7c] sm:$0xf]
        %v444 = vunpack.c.l.b16 %v380
        %v445 = vunpack.c.l.b16 %v381
        %v446 = vunpack.c.l.b16 %v382
        %v447 = vunpack.c.l.b16 %v383
        %v448 = vunpack.c.l.b16 %v384
        %v449 = vunpack.c.l.b16 %v385
        %v450 = vunpack.c.l.b16 %v386
        %v451 = vunpack.c.l.b16 %v387
        %v452 = vunpack.c.l.b16 %v388
        %v453 = vunpack.c.l.b16 %v389
        %v454 = vunpack.c.l.b16 %v390
        %v455 = vunpack.c.l.b16 %v391
        %v456 = vunpack.c.l.b16 %v392
        %v457 = vunpack.c.l.b16 %v393
        %v458 = vunpack.c.l.b16 %v394
        %v459 = vunpack.c.l.b16 %v395
        %v460 = vunpack.c.l.b16 %v396
        %v461 = vunpack.c.l.b16 %v397
        %v462 = vunpack.c.l.b16 %v398
        %v463 = vunpack.c.l.b16 %v399
        %v464 = vunpack.c.l.b16 %v400
        %v465 = vunpack.c.l.b16 %v401
        %v466 = vunpack.c.l.b16 %v402
        %v467 = vunpack.c.l.b16 %v403
        %v468 = vunpack.c.l.b16 %v404
        %v469 = vunpack.c.l.b16 %v405
        %v470 = vunpack.c.l.b16 %v406
        %v471 = vunpack.c.l.b16 %v407
        %v472 = vunpack.c.l.b16 %v408
        %v473 = vunpack.c.l.b16 %v409
        %v474 = vunpack.c.l.b16 %v410
        %v475 = vunpack.c.l.b16 %v411
        %v476 = vpack.c.b16 %v445, %v444
        %v477 = vpack.c.b16 %v447, %v446
        %v478 = vpack.c.b16 %v449, %v448
        %v479 = vpack.c.b16 %v451, %v450
        %v480 = vpack.c.b16 %v453, %v452
        %v481 = vpack.c.b16 %v455, %v454
        %v482 = vpack.c.b16 %v457, %v456
        %v483 = vpack.c.b16 %v459, %v458
        %v484 = vpack.c.b16 %v461, %v460
        %v485 = vpack.c.b16 %v463, %v462
        %v486 = vpack.c.b16 %v465, %v464
        %v487 = vpack.c.b16 %v467, %v466
        %v488 = vpack.c.b16 %v469, %v468
        %v489 = vpack.c.b16 %v471, %v470
        %v490 = vpack.c.b16 %v473, %v472
        %v491 = vpack.c.b16 %v475, %v474
        %508 = vmatprep.subr.bf16.mxu0 0
        %509 = vmatpush1.bf16.msra.mxu0 %v483
        %510 = vmatprep.subr.bf16.mxu0 0
        %511 = vmatpush1.bf16.msra.mxu0 %v482
        %512 = vmatprep.subr.bf16.mxu0 0
        %513 = vmatpush1.bf16.msra.mxu0 %v481
        %514 = vmatprep.subr.bf16.mxu0 0
        %515 = vmatpush1.bf16.msra.mxu0 %v480
        %516 = vmatprep.subr.bf16.mxu0 0
        %517 = vmatpush1.bf16.msra.mxu0 %v479
        %518 = vmatprep.subr.bf16.mxu0 0
        %519 = vmatpush1.bf16.msra.mxu0 %v478
        %520 = vmatprep.subr.bf16.mxu0 0
        %521 = vmatpush1.bf16.msra.mxu0 %v477
        %522 = vmatprep.subr.bf16.mxu0 0
        %523 = vmatpush1.bf16.msra.mxu0 %v476
        %524 = vmatprep.subr.bf16.mxu0 0
        %525 = vmatpush2.bf16.msra.mxu0 %v491
        %526 = vmatprep.subr.bf16.mxu0 0
        %527 = vmatpush2.bf16.msra.mxu0 %v490
        %528 = vmatprep.subr.bf16.mxu0 0
        %529 = vmatpush2.bf16.msra.mxu0 %v489
        %530 = vmatprep.subr.bf16.mxu0 0
        %531 = vmatpush2.bf16.msra.mxu0 %v488
        %532 = vmatprep.subr.bf16.mxu0 0
        %533 = vmatpush2.bf16.msra.mxu0 %v487
        %534 = vmatprep.subr.bf16.mxu0 0
        %535 = vmatpush2.bf16.msra.mxu0 %v486
        %536 = vmatprep.subr.bf16.mxu0 0
        %537 = vmatpush2.bf16.msra.mxu0 %v485
        %538 = vmatprep.subr.bf16.mxu0 0
        %539 = vmatpush2.bf16.msra.mxu0 %v484
        %540 = vmatprep.mubr.bf16.mxu0 %v377
        %541 = vmatmul.mubr.bf16.gmra.mxu0 %v376
        %v542 = vpop.f32.mrf.mxu0
        %v543 = vadd.f32 0.0, %v542
        %v544 = vpop.f32.mrf.mxu0
        %v545 = vpop.f32.mrf.mxu0
        %v546 = vadd.f32 0.0, %v545
        %v547 = vpop.f32.mrf.mxu0
        %548 = vdwg.mxu0
        %v549 = vadd.f32 %v378, %v543
        %v550 = vadd.f32 %v379, %v546
        %551 = vst [vmem:[%s331] sm:$0xff] %v549
        %552 = vst [vmem:[%s331 + $0x8] sm:$0xff] %v550
        %s553 = sand.u32 %s161, 1
        %s554 = scalar_lea.sflag [#allocation4], %s553
        %s555 = sand.u32 %s161, 1
        %s556 = smul.addr %s555, 16
        %s557 = scalar_lea.vmem [#allocation8], %s556
        // Predicated region
        $region53: #{tpu_custom_call.1} parent=35 // pred_check
          %p558 = pneg %p171
        $region54: #{tpu_custom_call.1} parent=35 // pred_check_branch
          %560 = sbr.rel (%p558) target = $region56
        $region55: #{tpu_custom_call.1} parent=35 // pred_region
          %s561 = smul.u32 2, %s29
          %s563 = ssub.s32 256, 256
          %564 = vsyncadd %s554, %s563
          %s565 = smul.addr %s561, 2
          %s566 = sadd.s32 %s30, %s565
          %s567 = smul.addr %s566, 128
          %s568 = scalar_lea.hbm %s4, %s567
          %s569 = sshll.u32 %s557, 4
          %s570 = int_to_ptr.vmem [resolvable:$true] %s569
          %575 = dma.vmem_to_hbm [thread:$0]  %s570, 256, %s568, %s554, 128, 256, 8
        $region56: #{tpu_custom_call.1} parent=35 // pred_fallthru
          _
      $region36: #{tpu_custom_call.1} parent=5 // pred_fallthru
        _
      %p576 = scmp.le.s32.totalorder 2, %s19
      // Predicated region
      $region57: #{tpu_custom_call.1} parent=5 // pred_check
        %p577 = pneg %p576
      $region58: #{tpu_custom_call.1} parent=5 // pred_check_branch
        %579 = sbr.rel (%p577) target = $region60
      $region59: #{tpu_custom_call.1} parent=5 // pred_region
        %s580 = ssub.s32 %s19, 2
        // Predicated region
        $region61: #{tpu_custom_call.1} parent=59 // pred_check
          %p581 = pneg %p177
        $region62: #{tpu_custom_call.1} parent=59 // pred_check_branch
          %583 = sbr.rel (%p581) target = $region64
        $region63: #{tpu_custom_call.1} parent=59 // pred_region
          %s584 = sand.u32 %s162, 1
          %s585 = scalar_lea.sflag [#allocation4], %s584
          %s586 = sand.u32 %s162, 1
          %s587 = smul.addr %s586, 16
          %s588 = scalar_lea.vmem [#allocation8], %s587
          %589 = dma.done %s585, 256
        $region64: #{tpu_custom_call.1} parent=59 // pred_fallthru
          _
      $region60: #{tpu_custom_call.1} parent=5 // pred_fallthru
        _
    $region6: #{tpu_custom_call.1} parent=1 // loop_footer
      %s23 = sadd.s32 1, %s19
    $region7: #{tpu_custom_call.1} parent=1 // loop_footer_branch
      %18 = sbr.rel target = $region3
    $region8: #{tpu_custom_call.1} parent=1 // loop_exit
      _
    %590 = vsyncpa [#allocation3], 1
    %s591 = scalar_lea.sflag [#allocation3], 1
    %592 = vsyncpa %s591, 1
    %593 = vsyncpa [#allocation6], 1
    %s594 = scalar_lea.sflag [#allocation6], 1
    %595 = vsyncpa %s594, 1
    %596 = vsyncpa [#allocation4], 1
    %s597 = scalar_lea.sflag [#allocation4], 1
    %598 = vsyncpa %s597, 1

</llo_original>
